<compile_context>
chip_gen: v7x
topology: tpu7x:2x2x1
jax: 0.10.0
libtpu: 0.0.40
codegen_flags: <defaults>
</compile_context>

<pallas_src>
import functools

import jax
import jax.numpy as jnp
from jax import lax
from jax.experimental import pallas as pl
from jax.experimental.pallas import tpu as pltpu


def _round_up(x, m):
    return (x + m - 1) // m * m


# Row bands inside the packed weight/bias slabs (all offsets 16-aligned so
# bf16 packed-sublane slices stay aligned).
_R1, _R2, _R3, _R4 = 0, 64, 96, 112  # fc1(64) | fc2(32) | fc3(8->16) | fc4(A->band4)


def _mlp_kernel(x_ref, w_ref, b_ref, o_ref, *, state_size, band4, out_rows):
    """Fused fc1->relu->fc2->relu->fc3->relu->fc4 on one batch tile.

    x_ref is (batch_tile, S) in the caller's natural row-major layout; the
    first dot contracts x's feature (last) axis directly, which puts batch on
    the lane axis for the whole intermediate chain and the output store.
    """
    x = x_ref[...].astype(jnp.bfloat16)                                  # (BT, S)

    # fc1: (64, S) x (BT, S) contracted over S -> (64, BT).  Transposed-RHS
    # dot_general: Mosaic handles the flip on the otherwise-idle XLU path.
    h = lax.dot_general(w_ref[_R1:_R1 + 64, 0:state_size], x,
                        dimension_numbers=(((1,), (1,)), ((), ())),
                        preferred_element_type=jnp.float32)
    # Bias add / ReLU in f32 (v5e-safe), then immediately drop to bf16 so the
    # live footprint stays small at wide batch tiles (v6e/v7x vreg pressure).
    h = jnp.maximum(h + b_ref[_R1:_R1 + 64, :], 0.0).astype(jnp.bfloat16)

    # fc2: (32, 64) @ (64, BT)
    h = jnp.dot(w_ref[_R2:_R2 + 32, 0:64], h,
                preferred_element_type=jnp.float32)
    h = jnp.maximum(h + b_ref[_R2:_R2 + 32, :], 0.0).astype(jnp.bfloat16)

    # fc3 (rows zero-padded 8->16): (16, 32) @ (32, BT).
    # INVARIANT: padded rows of w_slab AND b_slab are exactly zero, so padded
    # rows stay 0 through ReLU and contribute nothing to fc4.
    h = jnp.dot(w_ref[_R3:_R3 + 16, 0:32], h,
                preferred_element_type=jnp.float32)
    h = jnp.maximum(h + b_ref[_R3:_R3 + 16, :], 0.0).astype(jnp.bfloat16)

    # fc4 (rows A->band4, cols 8->16, zero-padded): (band4, 16) @ (16, BT)
    out = jnp.dot(w_ref[_R4:_R4 + band4, 0:16], h,
                  preferred_element_type=jnp.float32)
    out = out + b_ref[_R4:_R4 + band4, :]

    # Lane-dense (rows x batch_tile) store; padded rows sliced off in wrapper.
    o_ref[...] = out[0:out_rows, :].astype(o_ref.dtype)


def pack_params(params):
    """Pack PyTorch-layout params into the kernel's weight/bias slabs.

    Call this ONCE per parameter update (e.g. optimizer step / target-net
    sync), not per forward: the slab packing is ~8 XLA ops and would dominate
    the small-batch act() latency if done per call.

    params: w{1..4}: (out_features, in_features), b{1..4}: (out_features,)
    """
    S = params["w1"].shape[1]
    A = params["w4"].shape[0]
    band4 = _round_up(max(A, 16), 16)     # fc4 row band inside the slab
    slab_rows = _R4 + band4
    cols = _round_up(max(S, 64), 128)

    # NOTE: slabs are zero-initialized; padded rows/cols MUST stay zero (the
    # fc3/fc4 band correctness relies on zero-padded weights AND biases).
    w_slab = jnp.zeros((slab_rows, cols), jnp.bfloat16)
    w_slab = w_slab.at[_R1:_R1 + 64, 0:S].set(params["w1"].astype(jnp.bfloat16))
    w_slab = w_slab.at[_R2:_R2 + 32, 0:64].set(params["w2"].astype(jnp.bfloat16))
    w_slab = w_slab.at[_R3:_R3 + 8, 0:32].set(params["w3"].astype(jnp.bfloat16))
    w_slab = w_slab.at[_R4:_R4 + A, 0:8].set(params["w4"].astype(jnp.bfloat16))

    b_slab = jnp.zeros((slab_rows, 1), jnp.float32)
    b_slab = b_slab.at[_R1:_R1 + 64, 0].set(params["b1"].astype(jnp.float32))
    b_slab = b_slab.at[_R2:_R2 + 32, 0].set(params["b2"].astype(jnp.float32))
    b_slab = b_slab.at[_R3:_R3 + 8, 0].set(params["b3"].astype(jnp.float32))
    b_slab = b_slab.at[_R4:_R4 + A, 0].set(params["b4"].astype(jnp.float32))

    return {"w_slab": w_slab, "b_slab": b_slab,
            "state_size": S, "action_size": A, "band4": band4}


def _pick_batch_tile(batch, requested):
    """Lane-dense tile that divides round_up(B,128); >=2 grid steps if possible."""
    b128 = _round_up(batch, 128)
    t = min(_round_up(max(int(requested), 128), 128), b128)
    while b128 % t:                 # avoid dead padded tiles (e.g. B=640, t=512)
        t -= 128
    if b128 // t < 2 and b128 >= 256:
        # Guarantee >=2 tiles so both v7x TensorCores get fed.
        t2 = t - 128
        while t2 >= 128 and b128 % t2:
            t2 -= 128
        if t2 >= 128:
            t = t2
    return t, b128


def stock_model_forward(x, packed, *, batch_tile=512):
    """StockModel forward pass via one Pallas TPU kernel.

    x: (B, state_size), bf16 preferred (halves the dominant DMA); f32 accepted.
    packed: output of pack_params(params).
    returns (B, action_size) float32.
    """
    B, S = x.shape
    assert S == packed["state_size"]
    A = packed["action_size"]
    band4 = packed["band4"]
    A_pad = _round_up(A, 8)               # output rows (unmasked sublane stores)
    w_slab, b_slab = packed["w_slab"], packed["b_slab"]
    slab_rows, cols = w_slab.shape

    tile, B_pad = _pick_batch_tile(B, batch_tile)
    grid = (B_pad // tile,)

    # Pad batch only when ragged (no-op for training-size batches).
    if B_pad != B:
        x = jnp.pad(x, ((0, B_pad - B), (0, 0)))

    kernel = functools.partial(_mlp_kernel, state_size=S, band4=band4,
                               out_rows=A_pad)

    flops = 2 * B_pad * (S * 64 + 64 * 32 + 32 * 16 + 16 * band4)
    bytes_accessed = (B_pad * S * x.dtype.itemsize          # x stream
                      + A_pad * B_pad * 4                   # output stream
                      + slab_rows * cols * 2 + slab_rows * 4)  # resident slabs

    out_t = pl.pallas_call(
        kernel,
        out_shape=jax.ShapeDtypeStruct((A_pad, B_pad), jnp.float32),
        grid=grid,
        in_specs=[
            # x tile in natural layout: one contiguous DMA per tile.
            pl.BlockSpec((tile, S), lambda i: (i, 0)),
            # Weight / bias slabs: constant index_map -> fetched once, resident.
            pl.BlockSpec((slab_rows, cols), lambda i: (0, 0)),
            pl.BlockSpec((slab_rows, 1), lambda i: (0, 0)),
        ],
        out_specs=pl.BlockSpec((A_pad, tile), lambda i: (0, i)),
        compiler_params=pltpu.CompilerParams(
            dimension_semantics=("parallel",)),  # batch tiles are independent
        cost_estimate=pl.CostEstimate(flops=int(flops), transcendentals=0,
                                      bytes_accessed=int(bytes_accessed)),
    )(x, w_slab, b_slab)

    # Tiny (A_pad x B) slice+transpose; XLA fuses it into one small copy.
    return out_t[:A, :B].T


def init_params(key, state_size, action_size):
    """nn.Linear-style init, PyTorch layout: w (out, in), b (out,)."""
    dims = [(state_size, 64), (64, 32), (32, 8), (8, action_size)]
    params = {}
    for idx, (fan_in, fan_out) in enumerate(dims, start=1):
        key, kw, kb = jax.random.split(key, 3)
        bound = 1.0 / (fan_in ** 0.5)
        params[f"w{idx}"] = jax.random.uniform(
            kw, (fan_out, fan_in), jnp.float32, -bound, bound)
        params[f"b{idx}"] = jax.random.uniform(
            kb, (fan_out,), jnp.float32, -bound, bound)
    return params


def reference_forward(x, params):
    h = jnp.maximum(x @ params["w1"].T + params["b1"], 0.0)
    h = jnp.maximum(h @ params["w2"].T + params["b2"], 0.0)
    h = jnp.maximum(h @ params["w3"].T + params["b3"], 0.0)
    return h @ params["w4"].T + params["b4"]


if __name__ == "__main__":
    state_size = 16   # lookback window length
    action_size = 3   # buy / hold / sell

    key = jax.random.PRNGKey(0)
    key, kx = jax.random.split(key)
    params = init_params(key, state_size, action_size)
    packed = pack_params(params)          # hoisted: packed once, reused below

    # Training-size batch: tile picker gives >=2 grid steps (both v7x TCs fed).
    batch = 512
    x = jax.random.normal(kx, (batch, state_size), jnp.float32)
    x_bf16 = x.astype(jnp.bfloat16)       # ship bf16: halves the x DMA bytes
    out = jax.block_until_ready(
        stock_model_forward(x_bf16, packed, batch_tile=512))
    ref = reference_forward(x, params)
    assert out.shape == (batch, action_size)
    # bf16 MXU operands / bf16 x -> loosened tolerance vs pure-f32 reference.
    assert jnp.allclose(out, ref, atol=5e-2, rtol=5e-2), "mismatch vs reference"

    # Ragged small batch (DQN act()-style) exercises the padding path.
    x_small = x_bf16[:8]
    out_small = jax.block_until_ready(stock_model_forward(x_small, packed))
    assert out_small.shape == (8, action_size)
    assert jnp.allclose(out_small, reference_forward(x[:8], params),
                        atol=5e-2, rtol=5e-2), "mismatch vs reference (small batch)"

    print("KERNEL_OK")
</pallas_src>

<mosaic_0001>
module attributes {stable_mosaic.version = 11 : i64} {
  func.func @_mlp_kernel(%arg0: i32, %arg1: memref<256x16xbf16, #tpu.memory_space<vmem>>, %arg2: memref<128x128xbf16, #tpu.memory_space<vmem>>, %arg3: memref<128x1xf32, #tpu.memory_space<vmem>>, %arg4: memref<8x256xf32, #tpu.memory_space<vmem>>) attributes {dimension_semantics = [#tpu.dimension_semantics<parallel>], iteration_bounds = array<i64: 2>, scalar_prefetch = 0 : i64, scratch_operands = 0 : i64, tpu.core_type = #tpu.core_type<tc>, window_params = [{transform_indices = @transform_0, window_bounds = array<i64: 256, 16>}, {pipeline_mode = #tpu.pipeline_mode<synchronous>, transform_indices = @transform_1, window_bounds = array<i64: 128, 128>}, {pipeline_mode = #tpu.pipeline_mode<synchronous>, transform_indices = @transform_2, window_bounds = array<i64: 128, 1>}, {transform_indices = @transform_3, window_bounds = array<i64: 8, 256>}]} {
    %c0 = arith.constant 0 : index
    %c0_0 = arith.constant 0 : index
    %0 = vector.load %arg1[%c0, %c0_0] : memref<256x16xbf16, #tpu.memory_space<vmem>>, vector<256x16xbf16>
    %c0_1 = arith.constant 0 : index
    %c0_2 = arith.constant 0 : index
    %1 = vector.load %arg2[%c0_1, %c0_2] : memref<128x128xbf16, #tpu.memory_space<vmem>>, vector<64x16xbf16>
    %cst = arith.constant dense<0.000000e+00> : vector<64x256xf32>
    %2 = tpu.matmul %1, %0, %cst {dimension_numbers = #tpu.dot_dimension_numbers<[1], [1], [0], [0], [0, 0, 1, 0], [], []>} : vector<64x16xbf16>, vector<256x16xbf16>, vector<64x256xf32> -> vector<64x256xf32>
    %c0_3 = arith.constant 0 : index
    %c0_4 = arith.constant 0 : index
    %3 = vector.load %arg3[%c0_3, %c0_4] : memref<128x1xf32, #tpu.memory_space<vmem>>, vector<64x1xf32>
    %4 = vector.broadcast %3 : vector<64x1xf32> to vector<64x256xf32>
    %5 = arith.addf %2, %4 : vector<64x256xf32>
    %cst_5 = arith.constant 0.000000e+00 : f32
    %6 = vector.broadcast %cst_5 : f32 to vector<64x256xf32>
    %7 = arith.maximumf %5, %6 : vector<64x256xf32>
    %8 = arith.truncf %7 : vector<64x256xf32> to vector<64x256xbf16>
    %c64 = arith.constant 64 : index
    %c0_6 = arith.constant 0 : index
    %9 = vector.load %arg2[%c64, %c0_6] : memref<128x128xbf16, #tpu.memory_space<vmem>>, vector<32x64xbf16>
    %cst_7 = arith.constant dense<0.000000e+00> : vector<32x256xf32>
    %10 = tpu.matmul %9, %8, %cst_7 {dimension_numbers = #tpu.dot_dimension_numbers<[1], [0], [0], [1], [0, 0, 1, 1], [], []>} : vector<32x64xbf16>, vector<64x256xbf16>, vector<32x256xf32> -> vector<32x256xf32>
    %c64_8 = arith.constant 64 : index
    %c0_9 = arith.constant 0 : index
    %11 = vector.load %arg3[%c64_8, %c0_9] : memref<128x1xf32, #tpu.memory_space<vmem>>, vector<32x1xf32>
    %12 = vector.broadcast %11 : vector<32x1xf32> to vector<32x256xf32>
    %13 = arith.addf %10, %12 : vector<32x256xf32>
    %cst_10 = arith.constant 0.000000e+00 : f32
    %14 = vector.broadcast %cst_10 : f32 to vector<32x256xf32>
    %15 = arith.maximumf %13, %14 : vector<32x256xf32>
    %16 = arith.truncf %15 : vector<32x256xf32> to vector<32x256xbf16>
    %c96 = arith.constant 96 : index
    %c0_11 = arith.constant 0 : index
    %17 = vector.load %arg2[%c96, %c0_11] : memref<128x128xbf16, #tpu.memory_space<vmem>>, vector<16x32xbf16>
    %cst_12 = arith.constant dense<0.000000e+00> : vector<16x256xf32>
    %18 = tpu.matmul %17, %16, %cst_12 {dimension_numbers = #tpu.dot_dimension_numbers<[1], [0], [0], [1], [0, 0, 1, 1], [], []>} : vector<16x32xbf16>, vector<32x256xbf16>, vector<16x256xf32> -> vector<16x256xf32>
    %c96_13 = arith.constant 96 : index
    %c0_14 = arith.constant 0 : index
    %19 = vector.load %arg3[%c96_13, %c0_14] : memref<128x1xf32, #tpu.memory_space<vmem>>, vector<16x1xf32>
    %20 = vector.broadcast %19 : vector<16x1xf32> to vector<16x256xf32>
    %21 = arith.addf %18, %20 : vector<16x256xf32>
    %cst_15 = arith.constant 0.000000e+00 : f32
    %22 = vector.broadcast %cst_15 : f32 to vector<16x256xf32>
    %23 = arith.maximumf %21, %22 : vector<16x256xf32>
    %24 = arith.truncf %23 : vector<16x256xf32> to vector<16x256xbf16>
    %c112 = arith.constant 112 : index
    %c0_16 = arith.constant 0 : index
    %25 = vector.load %arg2[%c112, %c0_16] : memref<128x128xbf16, #tpu.memory_space<vmem>>, vector<16x16xbf16>
    %cst_17 = arith.constant dense<0.000000e+00> : vector<16x256xf32>
    %26 = tpu.matmul %25, %24, %cst_17 {dimension_numbers = #tpu.dot_dimension_numbers<[1], [0], [0], [1], [0, 0, 1, 1], [], []>} : vector<16x16xbf16>, vector<16x256xbf16>, vector<16x256xf32> -> vector<16x256xf32>
    %c112_18 = arith.constant 112 : index
    %c0_19 = arith.constant 0 : index
    %27 = vector.load %arg3[%c112_18, %c0_19] : memref<128x1xf32, #tpu.memory_space<vmem>>, vector<16x1xf32>
    %28 = vector.broadcast %27 : vector<16x1xf32> to vector<16x256xf32>
    %29 = arith.addf %26, %28 : vector<16x256xf32>
    %30 = vector.extract_strided_slice %29 {offsets = [0, 0], sizes = [8, 256], strides = [1, 1]} : vector<16x256xf32> to vector<8x256xf32>
    %c0_20 = arith.constant 0 : index
    %c0_21 = arith.constant 0 : index
    %31 = vector.load %arg4[%c0_20, %c0_21] : memref<8x256xf32, #tpu.memory_space<vmem>>, vector<8x256xf32>
    tpu.vector_store %arg4[%c0_20, %c0_21], %30 {strides = array<i32>} : memref<8x256xf32, #tpu.memory_space<vmem>>, vector<8x256xf32>,
    return
  }
  func.func @transform_0(%arg0: i32) -> (i32, i32) {
    %c0_i32 = arith.constant 0 : i32
    %c0_i32_0 = arith.constant 0 : i32
    return %arg0, %c0_i32 : i32, i32
  }
  func.func @transform_1(%arg0: i32) -> (i32, i32) {
    %c0_i32 = arith.constant 0 : i32
    %c0_i32_0 = arith.constant 0 : i32
    %c0_i32_1 = arith.constant 0 : i32
    return %c0_i32, %c0_i32_0 : i32, i32
  }
  func.func @transform_2(%arg0: i32) -> (i32, i32) {
    %c0_i32 = arith.constant 0 : i32
    %c0_i32_0 = arith.constant 0 : i32
    %c0_i32_1 = arith.constant 0 : i32
    return %c0_i32, %c0_i32_0 : i32, i32
  }
  func.func @transform_3(%arg0: i32) -> (i32, i32) {
    %c0_i32 = arith.constant 0 : i32
    %c0_i32_0 = arith.constant 0 : i32
    return %c0_i32, %arg0 : i32, i32
  }
}

</mosaic_0001>

<llo_original>
// kernel: tpu_custom_call.1
$region0: #{tpu_custom_call.1}
  #allocation0 [shape = 'u32[]', space=smem, size = 0x4, offset = 0x4, fixed_abs, tag = 'smem constant byte address 0x4 - core index']
  #allocation1 [shape = 'u32[144,128]{1,0:T(1,128)}', space=vmem, size = 0x12000, scoped, tag = 'internal scratch']
  %s0 = inlined_call_operand.vmem [shape: bf16[512,16], index: 0, kind: input, shape index: {}]
  %s1 = inlined_call_operand.vmem [shape: bf16[128,128], index: 1, kind: input, shape index: {}]
  %s2 = inlined_call_operand.vmem [shape: f32[128,1], index: 2, kind: input, shape index: {}]
  %s3 = inlined_call_operand.hbm [shape: f32[8,512], index: 3, kind: output, shape index: {}]
  %s4 = sld [smem:[#allocation0]]
  $region45: #{tpu_custom_call.1} parent=0
    _
  %s6 = ssub.s32 1, %s4
  %s7 = scalar_select 0, %s6, %s4
  $region1: #{tpu_custom_call.1} parent=0
    #allocation2 [shape = 'u8[16384]{0}', space=vmem, size = 0x4000, scoped, tag = 'output window, operand 0']
    #allocation3 [shape = 's32[2]{0}', space=sflag, size = 0x8, scoped, tag = 'scoped memory for tpu_custom_call.1']
    %8 = vsyncpa [#allocation3], 0
    %s9 = scalar_lea.sflag [#allocation3], 1
    %10 = vsyncpa %s9, 0
    loop: start=0, step=1, limit=4
    $region2: #{tpu_custom_call.1} parent=1 // loop_pre_header
      _
    $region3: #{tpu_custom_call.1} parent=1 // loop_header
      %s12 = sphi 0, %s16
      %p13 = scmp.ge.s32.totalorder %s12, 4
      %s22 = sphi 0, %s24
      %s25 = sphi 0, %s22
      %s26 = sphi 0, %s25
      %s42 = sphi 0, %s26
      %s46 = sphi 0, %s46
      %s48 = sphi 0, %s46
      %s49 = sphi 0, %s48
      %s63 = sphi 0, %s49
      %s67 = sphi 0, %s67
      %s69 = sphi 0, %s67
      %s70 = sphi 0, %s69
      %s84 = sphi 0, %s70
      %s90 = sphi 0, %s92
      %s93 = sphi 0, %s90
      %s94 = sphi 0, %s93
      %s110 = sphi 0, %s94
    $region4: #{tpu_custom_call.1} parent=1 // loop_header_branch
      %15 = sbr.rel (%p13) target = $region8
    $region5: #{tpu_custom_call.1} parent=1 // loop_body
      %s17 = ssub.s32 %s12, 1
      %s18 = ssub.s32 %s12, 2
      %s19 = sadd.s32 %s12, 1
      %s20 = ssub.s32 %s12, %s19
      %p21 = scmp.eq.s32.totalorder %s20, 0
      %s23 = sadd.s32 %s22, 1
      %s24 = scalar_select %p21, %s22, %s23
      %p27 = pneg %p21
      %p28 = scmp.eq.s32.totalorder %s12, 1
      %p29 = por %p27, %p28
      %p30 = scmp.ne.s32.totalorder %s22, %s25
      %p31 = scmp.eq.s32.totalorder %s12, 0
      %p32 = por %p30, %p31
      %p33 = scmp.ne.s32.totalorder %s22, %s25
      %p34 = scmp.eq.s32.totalorder %s17, 1
      %p35 = por %p33, %p34
      %p36 = scmp.ne.s32.totalorder %s25, %s26
      %p37 = scmp.eq.s32.totalorder %s17, 0
      %p38 = por %p36, %p37
      %p39 = scmp.ne.s32.totalorder %s25, %s26
      %p40 = scmp.eq.s32.totalorder %s18, 1
      %p41 = por %p39, %p40
      %p43 = scmp.ne.s32.totalorder %s26, %s42
      %p44 = scmp.eq.s32.totalorder %s18, 0
      %p45 = por %p43, %p44
      %s47 = sadd.s32 %s46, 1
      %p50 = scmp.eq.s32.totalorder %s12, 1
      %p51 = scmp.ne.s32.totalorder %s46, %s48
      %p52 = scmp.eq.s32.totalorder %s12, 0
      %p53 = por %p51, %p52
      %p54 = scmp.ne.s32.totalorder %s46, %s48
      %p55 = scmp.eq.s32.totalorder %s17, 1
      %p56 = por %p54, %p55
      %p57 = scmp.ne.s32.totalorder %s48, %s49
      %p58 = scmp.eq.s32.totalorder %s17, 0
      %p59 = por %p57, %p58
      %p60 = scmp.ne.s32.totalorder %s48, %s49
      %p61 = scmp.eq.s32.totalorder %s18, 1
      %p62 = por %p60, %p61
      %p64 = scmp.ne.s32.totalorder %s49, %s63
      %p65 = scmp.eq.s32.totalorder %s18, 0
      %p66 = por %p64, %p65
      %s68 = sadd.s32 %s67, 1
      %p71 = scmp.eq.s32.totalorder %s12, 1
      %p72 = scmp.ne.s32.totalorder %s67, %s69
      %p73 = scmp.eq.s32.totalorder %s12, 0
      %p74 = por %p72, %p73
      %p75 = scmp.ne.s32.totalorder %s67, %s69
      %p76 = scmp.eq.s32.totalorder %s17, 1
      %p77 = por %p75, %p76
      %p78 = scmp.ne.s32.totalorder %s69, %s70
      %p79 = scmp.eq.s32.totalorder %s17, 0
      %p80 = por %p78, %p79
      %p81 = scmp.ne.s32.totalorder %s69, %s70
      %p82 = scmp.eq.s32.totalorder %s18, 1
      %p83 = por %p81, %p82
      %p85 = scmp.ne.s32.totalorder %s70, %s84
      %p86 = scmp.eq.s32.totalorder %s18, 0
      %p87 = por %p85, %p86
      %s88 = ssub.s32 %s12, %s19
      %p89 = scmp.eq.s32.totalorder %s88, 0
      %s91 = sadd.s32 %s90, 1
      %s92 = scalar_select %p89, %s90, %s91
      %p95 = pneg %p89
      %p96 = scmp.eq.s32.totalorder %s12, 1
      %p97 = por %p95, %p96
      %p98 = scmp.ne.s32.totalorder %s90, %s93
      %p99 = scmp.eq.s32.totalorder %s12, 0
      %p100 = por %p98, %p99
      %p101 = scmp.ne.s32.totalorder %s90, %s93
      %p102 = scmp.eq.s32.totalorder %s17, 1
      %p103 = por %p101, %p102
      %p104 = scmp.ne.s32.totalorder %s93, %s94
      %p105 = scmp.eq.s32.totalorder %s17, 0
      %p106 = por %p104, %p105
      %p107 = scmp.ne.s32.totalorder %s93, %s94
      %p108 = scmp.eq.s32.totalorder %s18, 1
      %p109 = por %p107, %p108
      %p111 = scmp.ne.s32.totalorder %s94, %s110
      %p112 = scmp.eq.s32.totalorder %s18, 0
      %p113 = por %p111, %p112
      %p114 = scmp.le.s32.totalorder 1, %s12
      %p115 = scmp.lt.s32.totalorder %s12, 3
      %p116 = pnand %p114, %p115
      %p117 = pneg %p116
      // Predicated region
      $region9: #{tpu_custom_call.1} parent=5 // pred_check
        _
      $region10: #{tpu_custom_call.1} parent=5 // pred_check_branch
        %119 = sbr.rel (%p116) target = $region12
      $region11: #{tpu_custom_call.1} parent=5 // pred_region
        %s120 = ssub.s32 %s12, 1
        // Predicated region
        $region13: #{tpu_custom_call.1} parent=11 // pred_check
          %p121 = pneg %p59
        $region14: #{tpu_custom_call.1} parent=11 // pred_check_branch
          %123 = sbr.rel (%p121) target = $region16
        $region15: #{tpu_custom_call.1} parent=11 // pred_region
          _
        $region16: #{tpu_custom_call.1} parent=11 // pred_fallthru
          _
        // Predicated region
        $region17: #{tpu_custom_call.1} parent=11 // pred_check
          %p124 = pneg %p80
        $region18: #{tpu_custom_call.1} parent=11 // pred_check_branch
          %126 = sbr.rel (%p124) target = $region20
        $region19: #{tpu_custom_call.1} parent=11 // pred_region
          _
        $region20: #{tpu_custom_call.1} parent=11 // pred_fallthru
          _
      $region12: #{tpu_custom_call.1} parent=5 // pred_fallthru
        _
      %p127 = scmp.lt.s32.totalorder %s12, 2
      // Predicated region
      $region21: #{tpu_custom_call.1} parent=5 // pred_check
        %p128 = pneg %p127
      $region22: #{tpu_custom_call.1} parent=5 // pred_check_branch
        %130 = sbr.rel (%p128) target = $region24
      $region23: #{tpu_custom_call.1} parent=5 // pred_region
        // Predicated region
        $region25: #{tpu_custom_call.1} parent=23 // pred_check
          %p131 = pneg %p32
        $region26: #{tpu_custom_call.1} parent=23 // pred_check_branch
          %133 = sbr.rel (%p131) target = $region28
        $region27: #{tpu_custom_call.1} parent=23 // pred_region
          %s134 = smul.u32 32, %s12
          %p135 = scmp.lt.s32.totalorder %s134, 63
          %s136 = scalar_select %p135, %s134, 63
          %s137 = smul.addr %s136, 4
          %s138 = scalar_lea.vmem %s0, %s137
          %s139 = smul.u32 32, %s12
        $region28: #{tpu_custom_call.1} parent=23 // pred_fallthru
          _
      $region24: #{tpu_custom_call.1} parent=5 // pred_fallthru
        _
      %p140 = scmp.le.s32.totalorder 1, %s12
      %p141 = scmp.lt.s32.totalorder %s12, 3
      %p142 = pnand %p140, %p141
      %p143 = pneg %p142
      // Predicated region
      $region29: #{tpu_custom_call.1} parent=5 // pred_check
        _
      $region30: #{tpu_custom_call.1} parent=5 // pred_check_branch
        %145 = sbr.rel (%p142) target = $region32
      $region31: #{tpu_custom_call.1} parent=5 // pred_region
        %s146 = ssub.s32 %s12, 1
        %s147 = smul.u32 32, %s17
        %p148 = scmp.lt.s32.totalorder %s147, 63
        %s149 = scalar_select %p148, %s147, 63
        %s150 = smul.addr %s149, 4
        %s151 = scalar_lea.vmem %s0, %s150
        %p152 = pneg %p38
        %p153 = pneg %p35
        %p154 = pneg %p59
        %p155 = pneg %p56
        %p156 = pneg %p80
        %p157 = pneg %p77
        %p158 = pneg %p106
        %p159 = pneg %p103
        %s160 = sand.u32 %s93, 1
        %s161 = scalar_lea.sflag [#allocation3], %s160
        %s162 = sand.u32 %s93, 1
        %s163 = smul.addr %s162, 16
        %s164 = scalar_lea.vmem [#allocation2], %s163
        %s165 = smul.u32 32, %s17
        %p166 = scmp.lt.s32.totalorder %s165, 63
        %s167 = scalar_select %p166, %s165, 63
        %s168 = smul.addr %s167, 4
        %s169 = scalar_lea.vmem %s0, %s168
        %s170 = smul.u32 32, %s17
        %s171 = smul.u32 2, %s17
        %v173 = vld [vmem:[%s169] sm:$0xf]
        %v174 = vld [vmem:[%s169 + $0x4] sm:$0xf]
        %v175 = vld [vmem:[%s169 + $0x8] sm:$0xf]
        %v176 = vld [vmem:[%s169 + $0xc] sm:$0xf]
        %v177 = vld [vmem:[%s169 + $0x10] sm:$0xf]
        %v178 = vld [vmem:[%s169 + $0x14] sm:$0xf]
        %v179 = vld [vmem:[%s169 + $0x18] sm:$0xf]
        %v180 = vld [vmem:[%s169 + $0x1c] sm:$0xf]
        %v181 = vld [vmem:[%s169 + $0x20] sm:$0xf]
        %v182 = vld [vmem:[%s169 + $0x24] sm:$0xf]
        %v183 = vld [vmem:[%s169 + $0x28] sm:$0xf]
        %v184 = vld [vmem:[%s169 + $0x2c] sm:$0xf]
        %v185 = vld [vmem:[%s169 + $0x30] sm:$0xf]
        %v186 = vld [vmem:[%s169 + $0x34] sm:$0xf]
        %v187 = vld [vmem:[%s169 + $0x38] sm:$0xf]
        %v188 = vld [vmem:[%s169 + $0x3c] sm:$0xf]
        %v189 = vld [vmem:[%s169 + $0x40] sm:$0xf]
        %v190 = vld [vmem:[%s169 + $0x44] sm:$0xf]
        %v191 = vld [vmem:[%s169 + $0x48] sm:$0xf]
        %v192 = vld [vmem:[%s169 + $0x4c] sm:$0xf]
        %v193 = vld [vmem:[%s169 + $0x50] sm:$0xf]
        %v194 = vld [vmem:[%s169 + $0x54] sm:$0xf]
        %v195 = vld [vmem:[%s169 + $0x58] sm:$0xf]
        %v196 = vld [vmem:[%s169 + $0x5c] sm:$0xf]
        %v197 = vld [vmem:[%s169 + $0x60] sm:$0xf]
        %v198 = vld [vmem:[%s169 + $0x64] sm:$0xf]
        %v199 = vld [vmem:[%s169 + $0x68] sm:$0xf]
        %v200 = vld [vmem:[%s169 + $0x6c] sm:$0xf]
        %v201 = vld [vmem:[%s169 + $0x70] sm:$0xf]
        %v202 = vld [vmem:[%s169 + $0x74] sm:$0xf]
        %v203 = vld [vmem:[%s169 + $0x78] sm:$0xf]
        %v204 = vld [vmem:[%s169 + $0x7c] sm:$0xf]
        %v205 = vld [vmem:[%s1] sm:$0xf]
        %v206 = vld [vmem:[%s1 + $0x4] sm:$0xf]
        %v207 = vld [vmem:[%s1 + $0x8] sm:$0xf]
        %v208 = vld [vmem:[%s1 + $0xc] sm:$0xf]
        %v209 = vld [vmem:[%s1 + $0x10] sm:$0xf]
        %v210 = vld [vmem:[%s1 + $0x14] sm:$0xf]
        %v211 = vld [vmem:[%s1 + $0x18] sm:$0xf]
        %v212 = vld [vmem:[%s1 + $0x1c] sm:$0xf]
        %v213 = vld [vmem:[%s2] sm:$0xff]
        %v214 = vld [vmem:[%s2 + $0x8] sm:$0xff]
        %v215 = vld [vmem:[%s2 + $0x10] sm:$0xff]
        %v216 = vld [vmem:[%s2 + $0x18] sm:$0xff]
        %v217 = vld [vmem:[%s2 + $0x20] sm:$0xff]
        %v218 = vld [vmem:[%s2 + $0x28] sm:$0xff]
        %v219 = vld [vmem:[%s2 + $0x30] sm:$0xff]
        %v220 = vld [vmem:[%s2 + $0x38] sm:$0xff]
        %222 = vset.pattern.permute.xlu0 0
        %223 = vperm.xlu0 %222, %v213
        %v224 = vpop.permute.xlu0 %223
        %227 = vset.pattern.permute.xlu0 0
        %228 = vperm.xlu0 %227, %v214
        %v229 = vpop.permute.xlu0 %228
        %232 = vset.pattern.permute.xlu0 0
        %233 = vperm.xlu0 %232, %v215
        %v234 = vpop.permute.xlu0 %233
        %237 = vset.pattern.permute.xlu0 0
        %238 = vperm.xlu0 %237, %v216
        %v239 = vpop.permute.xlu0 %238
        %242 = vset.pattern.permute.xlu0 0
        %243 = vperm.xlu0 %242, %v217
        %v244 = vpop.permute.xlu0 %243
        %247 = vset.pattern.permute.xlu0 0
        %248 = vperm.xlu0 %247, %v218
        %v249 = vpop.permute.xlu0 %248
        %252 = vset.pattern.permute.xlu0 0
        %253 = vperm.xlu0 %252, %v219
        %v254 = vpop.permute.xlu0 %253
        %257 = vset.pattern.permute.xlu0 0
        %258 = vperm.xlu0 %257, %v220
        %v259 = vpop.permute.xlu0 %258
        %v269 = vunpack.c.l.b16 %v205
        %v270 = vunpack.c.l.b16 %v206
        %v271 = vunpack.c.l.b16 %v207
        %v272 = vunpack.c.l.b16 %v208
        %v273 = vunpack.c.l.b16 %v209
        %v274 = vunpack.c.l.b16 %v210
        %v275 = vunpack.c.l.b16 %v211
        %v276 = vunpack.c.l.b16 %v212
        %v277 = vpack.c.b16 %v270, %v269
        %v278 = vpack.c.b16 %v272, %v271
        %v279 = vpack.c.b16 %v274, %v273
        %v280 = vpack.c.b16 %v276, %v275
        %v313 = vunpack.c.l.b16 %v173
        %v314 = vunpack.c.l.b16 %v174
        %v315 = vunpack.c.l.b16 %v175
        %v316 = vunpack.c.l.b16 %v176
        %v317 = vunpack.c.l.b16 %v177
        %v318 = vunpack.c.l.b16 %v178
        %v319 = vunpack.c.l.b16 %v179
        %v320 = vunpack.c.l.b16 %v180
        %v321 = vunpack.c.l.b16 %v181
        %v322 = vunpack.c.l.b16 %v182
        %v323 = vunpack.c.l.b16 %v183
        %v324 = vunpack.c.l.b16 %v184
        %v325 = vunpack.c.l.b16 %v185
        %v326 = vunpack.c.l.b16 %v186
        %v327 = vunpack.c.l.b16 %v187
        %v328 = vunpack.c.l.b16 %v188
        %v329 = vunpack.c.l.b16 %v189
        %v330 = vunpack.c.l.b16 %v190
        %v331 = vunpack.c.l.b16 %v191
        %v332 = vunpack.c.l.b16 %v192
        %v333 = vunpack.c.l.b16 %v193
        %v334 = vunpack.c.l.b16 %v194
        %v335 = vunpack.c.l.b16 %v195
        %v336 = vunpack.c.l.b16 %v196
        %v337 = vunpack.c.l.b16 %v197
        %v338 = vunpack.c.l.b16 %v198
        %v339 = vunpack.c.l.b16 %v199
        %v340 = vunpack.c.l.b16 %v200
        %v341 = vunpack.c.l.b16 %v201
        %v342 = vunpack.c.l.b16 %v202
        %v343 = vunpack.c.l.b16 %v203
        %v344 = vunpack.c.l.b16 %v204
        %v345 = vpack.c.b16 %v314, %v313
        %v346 = vpack.c.b16 %v316, %v315
        %v347 = vpack.c.b16 %v318, %v317
        %v348 = vpack.c.b16 %v320, %v319
        %v349 = vpack.c.b16 %v322, %v321
        %v350 = vpack.c.b16 %v324, %v323
        %v351 = vpack.c.b16 %v326, %v325
        %v352 = vpack.c.b16 %v328, %v327
        %v353 = vpack.c.b16 %v330, %v329
        %v354 = vpack.c.b16 %v332, %v331
        %v355 = vpack.c.b16 %v334, %v333
        %v356 = vpack.c.b16 %v336, %v335
        %v357 = vpack.c.b16 %v338, %v337
        %v358 = vpack.c.b16 %v340, %v339
        %v359 = vpack.c.b16 %v342, %v341
        %v360 = vpack.c.b16 %v344, %v343
        %vm361 = vcmask 130048
        %v363 = vsel %vm361, %v277, 0
        %v366 = vsel %vm361, %v278, 0
        %v369 = vsel %vm361, %v279, 0
        %v372 = vsel %vm361, %v280, 0
        %v375 = vsel %vm361, %v345, 0
        %v378 = vsel %vm361, %v346, 0
        %v381 = vsel %vm361, %v347, 0
        %v384 = vsel %vm361, %v348, 0
        %v387 = vsel %vm361, %v349, 0
        %v390 = vsel %vm361, %v350, 0
        %v393 = vsel %vm361, %v351, 0
        %v396 = vsel %vm361, %v352, 0
        %v399 = vsel %vm361, %v353, 0
        %v402 = vsel %vm361, %v354, 0
        %v405 = vsel %vm361, %v355, 0
        %v408 = vsel %vm361, %v356, 0
        %v411 = vsel %vm361, %v357, 0
        %v414 = vsel %vm361, %v358, 0
        %v417 = vsel %vm361, %v359, 0
        %v420 = vsel %vm361, %v360, 0
        %422 = vmatprep.subr.bf16.mxu0 0
        %423 = vmatpush1.bf16.xpose.msra.mxu0 %v375
        %424 = vmatprep.subr.bf16.mxu0 0
        %425 = vmatpush1.bf16.xpose.msra.mxu0 %v378
        %426 = vmatprep.subr.bf16.mxu0 0
        %427 = vmatpush1.bf16.xpose.msra.mxu0 %v381
        %428 = vmatprep.subr.bf16.mxu0 0
        %429 = vmatpush1.bf16.xpose.msra.mxu0 %v384
        %430 = vmatprep.subr.bf16.mxu0 0
        %431 = vmatpush1.bf16.xpose.msra.mxu0 %v387
        %432 = vmatprep.subr.bf16.mxu0 0
        %433 = vmatpush1.bf16.xpose.msra.mxu0 %v390
        %434 = vmatprep.subr.bf16.mxu0 0
        %435 = vmatpush1.bf16.xpose.msra.mxu0 %v393
        %436 = vmatprep.subr.bf16.mxu0 0
        %437 = vmatpush1.bf16.xpose.msra.mxu0 %v396
        %438 = vmatprep.subr.bf16.mxu0 0
        %439 = vmatpush1.bf16.xpose.msra.mxu0 %v399
        %440 = vmatprep.subr.bf16.mxu0 0
        %441 = vmatpush1.bf16.xpose.msra.mxu0 %v402
        %442 = vmatprep.subr.bf16.mxu0 0
        %443 = vmatpush1.bf16.xpose.msra.mxu0 %v405
        %444 = vmatprep.subr.bf16.mxu0 0
        %445 = vmatpush1.bf16.xpose.msra.mxu0 %v408
        %446 = vmatprep.subr.bf16.mxu0 0
        %447 = vmatpush1.bf16.xpose.msra.mxu0 %v411
        %448 = vmatprep.subr.bf16.mxu0 0
        %449 = vmatpush1.bf16.xpose.msra.mxu0 %v414
        %450 = vmatprep.subr.bf16.mxu0 0
        %451 = vmatpush1.bf16.xpose.msra.mxu0 %v417
        %452 = vmatprep.subr.bf16.mxu0 0
        %453 = vmatpush1.bf16.xpose.msra.mxu0 %v420
        %454 = vmatprep.mubr.bf16.mxu0 0
        %455 = vmatmul.mubr.bf16.gmra.mrb[0].mxu0 %v363
        %v456 = vpop.f32.mrb[0].mxu0
        %v457 = vadd.f32 %v224, %v456
        %v458 = vpop.f32.mrb[0].mxu0
        %v459 = vadd.f32 %v224, %v458
        %v460 = vpop.f32.mrb[0].mxu0
        %v461 = vadd.f32 %v229, %v460
        %v462 = vpop.f32.mrb[0].mxu0
        %v463 = vadd.f32 %v229, %v462
        %464 = vmatprep.mubr.bf16.mxu0 0
        %465 = vmatmul.mubr.bf16.gmra.mrb[0].mxu0 %v366
        %v466 = vpop.f32.mrb[0].mxu0
        %v467 = vadd.f32 %v234, %v466
        %v468 = vpop.f32.mrb[0].mxu0
        %v469 = vadd.f32 %v234, %v468
        %v470 = vpop.f32.mrb[0].mxu0
        %v471 = vadd.f32 %v239, %v470
        %v472 = vpop.f32.mrb[0].mxu0
        %v473 = vadd.f32 %v239, %v472
        %474 = vmatprep.mubr.bf16.mxu0 0
        %475 = vmatmul.mubr.bf16.gmra.mrb[0].mxu0 %v369
        %v476 = vpop.f32.mrb[0].mxu0
        %v477 = vadd.f32 %v244, %v476
        %v478 = vpop.f32.mrb[0].mxu0
        %v479 = vadd.f32 %v244, %v478
        %v480 = vpop.f32.mrb[0].mxu0
        %v481 = vadd.f32 %v249, %v480
        %v482 = vpop.f32.mrb[0].mxu0
        %v483 = vadd.f32 %v249, %v482
        %484 = vmatprep.mubr.bf16.mxu0 0
        %485 = vmatmul.mubr.bf16.gmra.mrb[0].mxu0 %v372
        %v486 = vpop.f32.mrb[0].mxu0
        %v487 = vadd.f32 %v254, %v486
        %v488 = vpop.f32.mrb[0].mxu0
        %v489 = vadd.f32 %v254, %v488
        %v490 = vpop.f32.mrb[0].mxu0
        %v491 = vadd.f32 %v259, %v490
        %v492 = vpop.f32.mrb[0].mxu0
        %v493 = vadd.f32 %v259, %v492
        %494 = vdwg.mxu0
        %v495 = vmax.f32 %v457, 0.0
        %v496 = vmax.f32 %v459, 0.0
        %v497 = vmax.f32 %v461, 0.0
        %v498 = vmax.f32 %v463, 0.0
        %v499 = vmax.f32 %v467, 0.0
        %v500 = vmax.f32 %v469, 0.0
        %v501 = vmax.f32 %v471, 0.0
        %v502 = vmax.f32 %v473, 0.0
        %v503 = vmax.f32 %v477, 0.0
        %v504 = vmax.f32 %v479, 0.0
        %v505 = vmax.f32 %v481, 0.0
        %v506 = vmax.f32 %v483, 0.0
        %v507 = vmax.f32 %v487, 0.0
        %v508 = vmax.f32 %v489, 0.0
        %v509 = vmax.f32 %v491, 0.0
        %v510 = vmax.f32 %v493, 0.0
        %v511 = vpack.c.bf16 %v497, %v495
        %v512 = vpack.c.bf16 %v498, %v496
        %v513 = vpack.c.bf16 %v501, %v499
        %v514 = vpack.c.bf16 %v502, %v500
        %v515 = vpack.c.bf16 %v505, %v503
        %v516 = vpack.c.bf16 %v506, %v504
        %v517 = vpack.c.bf16 %v509, %v507
        %v518 = vpack.c.bf16 %v510, %v508
        %v519 = vld [vmem:[%s1 + $0x20] sm:$0xf]
        %v520 = vld [vmem:[%s1 + $0x24] sm:$0xf]
        %v521 = vld [vmem:[%s1 + $0x28] sm:$0xf]
        %v522 = vld [vmem:[%s1 + $0x2c] sm:$0xf]
        %v523 = vld [vmem:[%s2 + $0x40] sm:$0xff]
        %v524 = vld [vmem:[%s2 + $0x48] sm:$0xff]
        %v525 = vld [vmem:[%s2 + $0x50] sm:$0xff]
        %v526 = vld [vmem:[%s2 + $0x58] sm:$0xff]
        %528 = vset.pattern.permute.xlu0 0
        %529 = vperm.xlu0 %528, %v523
        %v530 = vpop.permute.xlu0 %529
        %533 = vset.pattern.permute.xlu0 0
        %534 = vperm.xlu0 %533, %v524
        %v535 = vpop.permute.xlu0 %534
        %538 = vset.pattern.permute.xlu0 0
        %539 = vperm.xlu0 %538, %v525
        %v540 = vpop.permute.xlu0 %539
        %543 = vset.pattern.permute.xlu0 0
        %544 = vperm.xlu0 %543, %v526
        %v545 = vpop.permute.xlu0 %544
        %v551 = vunpack.c.l.b16 %v519
        %v552 = vunpack.c.l.b16 %v520
        %v553 = vunpack.c.l.b16 %v521
        %v554 = vunpack.c.l.b16 %v522
        %v555 = vpack.c.b16 %v552, %v551
        %v556 = vpack.c.b16 %v554, %v553
        %vm557 = vcmask 523264
        %v559 = vsel %vm557, %v555, 0
        %v562 = vsel %vm557, %v556, 0
        %564 = vmatprep.subr.bf16.mxu0 %v512
        %565 = vmatpush1.bf16.msra.mxu0 %v511
        %566 = vmatprep.subr.bf16.mxu0 %v514
        %567 = vmatpush1.bf16.msra.mxu0 %v513
        %568 = vmatprep.subr.bf16.mxu0 %v516
        %569 = vmatpush1.bf16.msra.mxu0 %v515
        %570 = vmatprep.subr.bf16.mxu0 %v518
        %571 = vmatpush1.bf16.msra.mxu0 %v517
        %572 = vmatprep.subr.bf16.mxu0 0
        %573 = vmatpush1.bf16.msra.mxu0 0
        %574 = vmatprep.subr.bf16.mxu0 0
        %575 = vmatpush1.bf16.msra.mxu0 0
        %576 = vmatprep.subr.bf16.mxu0 0
        %577 = vmatpush1.bf16.msra.mxu0 0
        %578 = vmatprep.subr.bf16.mxu0 0
        %579 = vmatpush1.bf16.msra.mxu0 0
        %580 = vmatprep.subr.bf16.mxu0 0
        %581 = vmatpush1.bf16.msra.mxu0 0
        %582 = vmatprep.subr.bf16.mxu0 0
        %583 = vmatpush1.bf16.msra.mxu0 0
        %584 = vmatprep.subr.bf16.mxu0 0
        %585 = vmatpush1.bf16.msra.mxu0 0
        %586 = vmatprep.subr.bf16.mxu0 0
        %587 = vmatpush1.bf16.msra.mxu0 0
        %588 = vmatprep.subr.bf16.mxu0 0
        %589 = vmatpush1.bf16.msra.mxu0 0
        %590 = vmatprep.subr.bf16.mxu0 0
        %591 = vmatpush1.bf16.msra.mxu0 0
        %592 = vmatprep.subr.bf16.mxu0 0
        %593 = vmatpush1.bf16.msra.mxu0 0
        %594 = vmatprep.subr.bf16.mxu0 0
        %595 = vmatpush1.bf16.msra.mxu0 0
        %596 = vmatprep.mubr.bf16.mxu0 0
        %597 = vmatmul.mubr.bf16.gmra.mrb[0].mxu0 %v559
        %v598 = vpop.f32.mrb[0].mxu0
        %v599 = vadd.f32 %v530, %v598
        %v600 = vpop.f32.mrb[0].mxu0
        %v601 = vadd.f32 %v530, %v600
        %v602 = vpop.f32.mrb[0].mxu0
        %v603 = vadd.f32 %v535, %v602
        %v604 = vpop.f32.mrb[0].mxu0
        %v605 = vadd.f32 %v535, %v604
        %606 = vmatprep.mubr.bf16.mxu0 0
        %607 = vmatmul.mubr.bf16.gmra.mrb[0].mxu0 %v562
        %v608 = vpop.f32.mrb[0].mxu0
        %v609 = vadd.f32 %v540, %v608
        %v610 = vpop.f32.mrb[0].mxu0
        %v611 = vadd.f32 %v540, %v610
        %v612 = vpop.f32.mrb[0].mxu0
        %v613 = vadd.f32 %v545, %v612
        %v614 = vpop.f32.mrb[0].mxu0
        %v615 = vadd.f32 %v545, %v614
        %616 = vdwg.mxu0
        %v617 = vmax.f32 %v599, 0.0
        %v618 = vmax.f32 %v601, 0.0
        %v619 = vmax.f32 %v603, 0.0
        %v620 = vmax.f32 %v605, 0.0
        %v621 = vmax.f32 %v609, 0.0
        %v622 = vmax.f32 %v611, 0.0
        %v623 = vmax.f32 %v613, 0.0
        %v624 = vmax.f32 %v615, 0.0
        %v625 = vpack.c.bf16 %v619, %v617
        %v626 = vpack.c.bf16 %v620, %v618
        %v627 = vpack.c.bf16 %v623, %v621
        %v628 = vpack.c.bf16 %v624, %v622
        %v629 = vld [vmem:[%s1 + $0x30] sm:$0xf]
        %v630 = vld [vmem:[%s1 + $0x34] sm:$0xf]
        %v631 = vld [vmem:[%s2 + $0x60] sm:$0xff]
        %v632 = vld [vmem:[%s2 + $0x68] sm:$0xff]
        %634 = vset.pattern.permute.xlu0 0
        %635 = vperm.xlu0 %634, %v631
        %v636 = vpop.permute.xlu0 %635
        %639 = vset.pattern.permute.xlu0 0
        %640 = vperm.xlu0 %639, %v632
        %v641 = vpop.permute.xlu0 %640
        %v645 = vunpack.c.l.b16 %v629
        %v646 = vunpack.c.l.b16 %v630
        %v647 = vpack.c.b16 %v646, %v645
        %vm648 = vcmask 261120
        %v650 = vsel %vm648, %v647, 0
        %652 = vmatprep.subr.bf16.mxu0 %v626
        %653 = vmatpush1.bf16.msra.mxu0 %v625
        %654 = vmatprep.subr.bf16.mxu0 %v628
        %655 = vmatpush1.bf16.msra.mxu0 %v627
        %656 = vmatprep.subr.bf16.mxu0 0
        %657 = vmatpush1.bf16.msra.mxu0 0
        %658 = vmatprep.subr.bf16.mxu0 0
        %659 = vmatpush1.bf16.msra.mxu0 0
        %660 = vmatprep.subr.bf16.mxu0 0
        %661 = vmatpush1.bf16.msra.mxu0 0
        %662 = vmatprep.subr.bf16.mxu0 0
        %663 = vmatpush1.bf16.msra.mxu0 0
        %664 = vmatprep.subr.bf16.mxu0 0
        %665 = vmatpush1.bf16.msra.mxu0 0
        %666 = vmatprep.subr.bf16.mxu0 0
        %667 = vmatpush1.bf16.msra.mxu0 0
        %668 = vmatprep.subr.bf16.mxu0 0
        %669 = vmatpush1.bf16.msra.mxu0 0
        %670 = vmatprep.subr.bf16.mxu0 0
        %671 = vmatpush1.bf16.msra.mxu0 0
        %672 = vmatprep.subr.bf16.mxu0 0
        %673 = vmatpush1.bf16.msra.mxu0 0
        %674 = vmatprep.subr.bf16.mxu0 0
        %675 = vmatpush1.bf16.msra.mxu0 0
        %676 = vmatprep.subr.bf16.mxu0 0
        %677 = vmatpush1.bf16.msra.mxu0 0
        %678 = vmatprep.subr.bf16.mxu0 0
        %679 = vmatpush1.bf16.msra.mxu0 0
        %680 = vmatprep.subr.bf16.mxu0 0
        %681 = vmatpush1.bf16.msra.mxu0 0
        %682 = vmatprep.subr.bf16.mxu0 0
        %683 = vmatpush1.bf16.msra.mxu0 0
        %684 = vmatprep.mubr.bf16.mxu0 0
        %685 = vmatmul.mubr.bf16.gmra.mrb[0].mxu0 %v650
        %v686 = vpop.f32.mrb[0].mxu0
        %v687 = vadd.f32 %v636, %v686
        %v688 = vpop.f32.mrb[0].mxu0
        %v689 = vadd.f32 %v636, %v688
        %v690 = vpop.f32.mrb[0].mxu0
        %v691 = vadd.f32 %v641, %v690
        %v692 = vpop.f32.mrb[0].mxu0
        %v693 = vadd.f32 %v641, %v692
        %694 = vdwg.mxu0
        %v695 = vmax.f32 %v687, 0.0
        %v696 = vmax.f32 %v689, 0.0
        %v697 = vmax.f32 %v691, 0.0
        %v698 = vmax.f32 %v693, 0.0
        %v699 = vpack.c.bf16 %v697, %v695
        %v700 = vpack.c.bf16 %v698, %v696
        %v701 = vld [vmem:[%s1 + $0x38] sm:$0xf]
        %v702 = vld [vmem:[%s1 + $0x3c] sm:$0xf]
        %v703 = vld [vmem:[%s2 + $0x70] sm:$0xff]
        %v704 = vld [vmem:[%s2 + $0x78] sm:$0xff]
        %706 = vset.pattern.permute.xlu0 0
        %707 = vperm.xlu0 %706, %v703
        %v708 = vpop.permute.xlu0 %707
        %711 = vset.pattern.permute.xlu0 0
        %712 = vperm.xlu0 %711, %v704
        %v713 = vpop.permute.xlu0 %712
        %v716 = vunpack.c.l.b16 %v701
        %v717 = vunpack.c.l.b16 %v702
        %v718 = vpack.c.b16 %v717, %v716
        %v720 = vsel %vm361, %v718, 0
        %722 = vmatprep.subr.bf16.mxu0 %v700
        %723 = vmatpush1.bf16.msra.mxu0 %v699
        %724 = vmatprep.subr.bf16.mxu0 0
        %725 = vmatpush1.bf16.msra.mxu0 0
        %726 = vmatprep.subr.bf16.mxu0 0
        %727 = vmatpush1.bf16.msra.mxu0 0
        %728 = vmatprep.subr.bf16.mxu0 0
        %729 = vmatpush1.bf16.msra.mxu0 0
        %730 = vmatprep.subr.bf16.mxu0 0
        %731 = vmatpush1.bf16.msra.mxu0 0
        %732 = vmatprep.subr.bf16.mxu0 0
        %733 = vmatpush1.bf16.msra.mxu0 0
        %734 = vmatprep.subr.bf16.mxu0 0
        %735 = vmatpush1.bf16.msra.mxu0 0
        %736 = vmatprep.subr.bf16.mxu0 0
        %737 = vmatpush1.bf16.msra.mxu0 0
        %738 = vmatprep.subr.bf16.mxu0 0
        %739 = vmatpush1.bf16.msra.mxu0 0
        %740 = vmatprep.subr.bf16.mxu0 0
        %741 = vmatpush1.bf16.msra.mxu0 0
        %742 = vmatprep.subr.bf16.mxu0 0
        %743 = vmatpush1.bf16.msra.mxu0 0
        %744 = vmatprep.subr.bf16.mxu0 0
        %745 = vmatpush1.bf16.msra.mxu0 0
        %746 = vmatprep.subr.bf16.mxu0 0
        %747 = vmatpush1.bf16.msra.mxu0 0
        %748 = vmatprep.subr.bf16.mxu0 0
        %749 = vmatpush1.bf16.msra.mxu0 0
        %750 = vmatprep.subr.bf16.mxu0 0
        %751 = vmatpush1.bf16.msra.mxu0 0
        %752 = vmatprep.subr.bf16.mxu0 0
        %753 = vmatpush1.bf16.msra.mxu0 0
        %754 = vmatprep.mubr.bf16.mxu0 0
        %755 = vmatmul.mubr.bf16.gmra.mrb[0].mxu0 %v720
        %v756 = vpop.f32.mrb[0].mxu0
        %v757 = vadd.f32 %v708, %v756
        %v758 = vpop.f32.mrb[0].mxu0
        %v759 = vadd.f32 %v708, %v758
        %v760 = vpop.f32.mrb[0].mxu0
        %v761 = vpop.f32.mrb[0].mxu0
        %762 = vdwg.mxu0
        %763 = vst [vmem:[%s164] sm:$0xff] %v757
        %764 = vst [vmem:[%s164 + $0x8] sm:$0xff] %v759
        %s765 = sand.u32 %s93, 1
        %s766 = scalar_lea.sflag [#allocation3], %s765
        %s767 = sand.u32 %s93, 1
        %s768 = smul.addr %s767, 16
        %s769 = scalar_lea.vmem [#allocation2], %s768
        // Predicated region
        $region33: #{tpu_custom_call.1} parent=31 // pred_check
          %p770 = pneg %p103
        $region34: #{tpu_custom_call.1} parent=31 // pred_check_branch
          %772 = sbr.rel (%p770) target = $region36
        $region35: #{tpu_custom_call.1} parent=31 // pred_region
          %s773 = smul.u32 2, %s17
          %s775 = ssub.s32 256, 256
          %776 = vsyncadd %s766, %s775
          %s777 = smul.addr %s773, 128
          %s778 = scalar_lea.hbm %s3, %s777
          %s780 = sshll.u32 %s769, 4
          %s781 = int_to_ptr.vmem [resolvable:$true] %s780
          %783 = dma.vmem_to_hbm [thread:$0]  %s781, 256, %s778, %s766
        $region36: #{tpu_custom_call.1} parent=31 // pred_fallthru
          _
      $region32: #{tpu_custom_call.1} parent=5 // pred_fallthru
        _
      %p784 = scmp.le.s32.totalorder 2, %s12
      // Predicated region
      $region37: #{tpu_custom_call.1} parent=5 // pred_check
        %p785 = pneg %p784
      $region38: #{tpu_custom_call.1} parent=5 // pred_check_branch
        %787 = sbr.rel (%p785) target = $region40
      $region39: #{tpu_custom_call.1} parent=5 // pred_region
        %s788 = ssub.s32 %s12, 2
        // Predicated region
        $region41: #{tpu_custom_call.1} parent=39 // pred_check
          %p789 = pneg %p109
        $region42: #{tpu_custom_call.1} parent=39 // pred_check_branch
          %791 = sbr.rel (%p789) target = $region44
        $region43: #{tpu_custom_call.1} parent=39 // pred_region
          %s792 = sand.u32 %s94, 1
          %s793 = scalar_lea.sflag [#allocation3], %s792
          %s794 = sand.u32 %s94, 1
          %s795 = smul.addr %s794, 16
          %s796 = scalar_lea.vmem [#allocation2], %s795
          %797 = dma.done %s793, 256
        $region44: #{tpu_custom_call.1} parent=39 // pred_fallthru
          _
      $region40: #{tpu_custom_call.1} parent=5 // pred_fallthru
        _
    $region6: #{tpu_custom_call.1} parent=1 // loop_footer
      %s16 = sadd.s32 1, %s12
    $region7: #{tpu_custom_call.1} parent=1 // loop_footer_branch
      %11 = sbr.rel target = $region3
    $region8: #{tpu_custom_call.1} parent=1 // loop_exit
      _
    %798 = vsyncpa [#allocation3], 1
    %s799 = scalar_lea.sflag [#allocation3], 1
    %800 = vsyncpa %s799, 1

</llo_original>
